<compile_context>
chip_gen: v6e
topology: v6e:2x2x1
jax: 0.10.0
libtpu: 0.0.40
codegen_flags: <defaults>
</compile_context>

<pallas_src>
import functools

import jax
import jax.numpy as jnp
from jax.experimental import pallas as pl
from jax.experimental.pallas import tpu as pltpu  # noqa: F401  (kept for completeness)

# ----------------------------- configuration --------------------------------
OPT = dict(
    cuda=-1, emb_dim=32, pos_dim=16, ner_dim=16,
    rnn=False, input_dropout=0.0, gcn_dropout=0.0, rnn_dropout=0.0,
    pre_denom=False, dep_dim=1, dep_type=0, self_loop=True, no_adj=False,
)
MEM_DIM = 32
NUM_LAYERS = 2

B, N = 2, 16                      # batch, number of nodes (seq len / ADJ_SIZE)
IN_DIM = OPT['emb_dim'] + OPT['pos_dim'] + OPT['ner_dim']   # 64

WORD_VOCAB, POS_VOCAB, NER_VOCAB, DEP_VOCAB = 50, 10, 8, 12


# ------------------------------ Pallas kernel --------------------------------
def _gcn_kernel(data_ref, w_ref, b_ref, out_ref, *,
                num_layers, self_loop, dep_dim, bn, layer_dims):
    """Fused GCN forward for the whole (batch-stacked) problem.

    data_ref : (BN, 128) packed slab  [A (BN lanes) | X (Din lanes) | denom (1) | pad].
    w_ref    : (sum(Din_l), M) concatenated weights, already transposed so that
               y = x @ W + b == torch Linear(x).
    b_ref    : (num_layers, M) stacked biases.
    """
    data = data_ref[...]                                      # (BN, 128)
    a = data[:, :bn]                                          # (BN, BN)
    x = data[:, bn:bn + layer_dims[0]]                        # (BN, Din0)
    denom = data[:, bn + layer_dims[0]:bn + layer_dims[0] + 1]  # (BN, 1), = 1 + rowsum
    inv = pl.reciprocal(denom, approx=False)                  # hoisted, loop-invariant

    b_all = b_ref[...]                                        # (L, M)

    off = 0
    for layer in range(num_layers):
        din = layer_dims[layer]
        w = w_ref[off:off + din, :]                           # static sublane slice
        off += din
        bias = b_all[layer:layer + 1, :]                      # (1, M)

        if (layer != 0 or dep_dim == 0) and self_loop:
            # W(Ax) + W(x) == (Ax + x) @ W + 2*b  (bias added twice, as torch)
            ax = jnp.dot(a, x, preferred_element_type=jnp.float32)
            h = jnp.dot(ax + x, w, preferred_element_type=jnp.float32) + 2.0 * bias
        else:
            # No self-loop (layer 0, dep_dim>0): associativity reorder
            # A @ (x @ W) -- cheaper since Din > M.
            xw = jnp.dot(x, w, preferred_element_type=jnp.float32)
            h = jnp.dot(a, xw, preferred_element_type=jnp.float32) + bias

        x = jnp.maximum(h * inv, 0.0)   # ReLU; gcn_drop identity (p=0 / eval)

    out_ref[...] = x


def _gcn_forward_impl(adj, dep_scalar, gcn_inputs, layer_params):
    """adj, dep_scalar: (B,N,N) f32; gcn_inputs: (B,N,in_dim) f32.

    layer_params: list of (W_t (Din,M), bias (M,)).
    Returns (gcn_out (B,N,M) f32, mask (B,N,1) bool)."""
    b_sz, n, d = gcn_inputs.shape
    m = layer_params[0][0].shape[1]
    bn = b_sz * n

    # --- JAX-side prep (cheap glue, fused by jit) ----------------------------
    # adj = dep_emb(dep).squeeze(3) * adj   (dep_dim == 1 path).
    if OPT['dep_dim'] > 0:
        wadj = (dep_scalar * adj).astype(jnp.float32)
    else:
        wadj = adj.astype(jnp.float32)

    # Row sums computed once: reused for both mask (here) and denom (in-kernel).
    row_sum = wadj.sum(2)                                     # (B, N)
    col_sum = wadj.sum(1)                                     # (B, N)
    mask = ((row_sum + col_sum) == 0.0)[..., None]            # (B, N, 1)

    # Block-diagonal adjacency (B*N, B*N): one 2-D matmul per layer for the
    # whole batch (exact: no cross-batch edges).
    eye = jnp.eye(b_sz, dtype=jnp.float32)
    a_bd = (eye[:, None, :, None] * wadj[:, :, None, :]).reshape(bn, bn)
    x2d = gcn_inputs.reshape(bn, d).astype(jnp.float32)
    denom_col = row_sum.reshape(bn, 1) + 1.0                  # (BN, 1)

    # Single lane-dense packed input: [A | X | denom | zero-pad] -> (BN, 128).
    used = bn + d + 1
    lane_total = max(128, ((used + 127) // 128) * 128)
    packed = jnp.concatenate(
        [a_bd, x2d, denom_col,
         jnp.zeros((bn, lane_total - used), jnp.float32)], axis=1)

    # Packed parameters: one weight matrix, one bias matrix (3 streams total).
    layer_dims = tuple(int(w_t.shape[0]) for w_t, _ in layer_params)
    w_cat = jnp.concatenate([w_t.astype(jnp.float32) for w_t, _ in layer_params], axis=0)
    b_cat = jnp.stack([bias.astype(jnp.float32) for _, bias in layer_params], axis=0)

    kernel = functools.partial(
        _gcn_kernel,
        num_layers=len(layer_params),
        self_loop=OPT['self_loop'],
        dep_dim=OPT['dep_dim'],
        bn=bn,
        layer_dims=layer_dims,
    )

    # Single invocation: no grid, whole (tiny) arrays resident in VMEM;
    # weights fetched exactly once.
    out2d = pl.pallas_call(
        kernel,
        out_shape=jax.ShapeDtypeStruct((bn, m), jnp.float32),
    )(packed, w_cat, b_cat)

    return out2d.reshape(b_sz, n, m), mask


# jit the wrapper + kernel so the surrounding glue fuses instead of
# dispatching eagerly (at these shapes dispatch overhead dominates).
gcn_forward = jax.jit(_gcn_forward_impl)


# --------------------------- pure-JAX reference -------------------------------
def reference_forward(adj, dep_scalar, x, layer_params):
    """Mirrors the torch module structure (un-fused self-loop, batched bmm)."""
    a = dep_scalar * adj if OPT['dep_dim'] > 0 else adj
    denom = a.sum(2)[..., None] + 1.0
    mask = ((a.sum(2) + a.sum(1)) == 0.0)[..., None]
    g = x
    for layer, (w_t, bias) in enumerate(layer_params):
        ax = jnp.einsum('bij,bjd->bid', a, g)
        axw = ax @ w_t + bias
        if (layer != 0 or OPT['dep_dim'] == 0) and OPT['self_loop']:
            axw = axw + g @ w_t + bias
        axw = axw / denom
        g = jax.nn.relu(axw)
    return g, mask


# ----------------------------------- main -------------------------------------
if __name__ == "__main__":
    key = jax.random.PRNGKey(0)
    keys = jax.random.split(key, 12)

    # Deterministic "embedding tables" and Linear parameters (synthetic init).
    word_tbl = 0.1 * jax.random.normal(keys[0], (WORD_VOCAB, OPT['emb_dim']), jnp.float32)
    pos_tbl = 0.1 * jax.random.normal(keys[1], (POS_VOCAB, OPT['pos_dim']), jnp.float32)
    ner_tbl = 0.1 * jax.random.normal(keys[2], (NER_VOCAB, OPT['ner_dim']), jnp.float32)
    dep_tbl = 0.5 + 0.1 * jax.random.normal(keys[3], (DEP_VOCAB, OPT['dep_dim']), jnp.float32)

    layer_params = []
    for layer in range(NUM_LAYERS):
        din = IN_DIM if layer == 0 else MEM_DIM
        w_t = 0.1 * jax.random.normal(keys[4 + 2 * layer], (din, MEM_DIM), jnp.float32)
        bias = 0.01 * jax.random.normal(keys[5 + 2 * layer], (MEM_DIM,), jnp.float32)
        layer_params.append((w_t, bias))

    # Inputs: token / POS / NER indices, dependency-label indices, adjacency.
    words = jax.random.randint(keys[8], (B, N), 0, WORD_VOCAB)
    pos = jax.random.randint(keys[9], (B, N), 0, POS_VOCAB)
    ner = jax.random.randint(keys[10], (B, N), 0, NER_VOCAB)
    dep = jax.random.randint(keys[11], (B, N, N), 0, DEP_VOCAB)
    adj = (jax.random.uniform(jax.random.PRNGKey(42), (B, N, N)) < 0.3).astype(jnp.float32)

    # Glue (plain JAX): embedding gathers + concat == torch.cat(embs, dim=2).
    embs = jnp.concatenate(
        [jnp.take(word_tbl, words, axis=0),
         jnp.take(pos_tbl, pos, axis=0),
         jnp.take(ner_tbl, ner, axis=0)], axis=2)               # (B, N, IN_DIM)
    # dep_emb(dep).squeeze(3)  (dep_dim == 1)
    dep_scalar = jnp.take(dep_tbl, dep, axis=0)[..., 0]         # (B, N, N)
    # TODO(synk): optional LSTM branch (opt['rnn']=True) not implemented in Pallas.

    out, mask = gcn_forward(adj, dep_scalar, embs, layer_params)
    jax.block_until_ready(out)
    jax.block_until_ready(mask)

    ref_out, ref_mask = reference_forward(adj, dep_scalar, embs, layer_params)
    assert jnp.allclose(out, ref_out, atol=1e-5, rtol=1e-5)
    assert bool(jnp.all(mask == ref_mask))
    print("KERNEL_OK")
</pallas_src>

<mosaic_0001>
module attributes {stable_mosaic.version = 11 : i64} {
  func.func @_gcn_kernel(%arg0: memref<32x128xf32, #tpu.memory_space<vmem>>, %arg1: memref<96x32xf32, #tpu.memory_space<vmem>>, %arg2: memref<2x32xf32, #tpu.memory_space<vmem>>, %arg3: memref<32x32xf32, #tpu.memory_space<vmem>>) attributes {dimension_semantics = [], scalar_prefetch = 0 : i64, scratch_operands = 0 : i64, tpu.core_type = #tpu.core_type<tc>} {
    %c0 = arith.constant 0 : index
    %c0_0 = arith.constant 0 : index
    %0 = vector.load %arg0[%c0, %c0_0] : memref<32x128xf32, #tpu.memory_space<vmem>>, vector<32x128xf32>
    %1 = vector.extract_strided_slice %0 {offsets = [0, 0], sizes = [32, 32], strides = [1, 1]} : vector<32x128xf32> to vector<32x32xf32>
    %2 = vector.extract_strided_slice %0 {offsets = [0, 32], sizes = [32, 64], strides = [1, 1]} : vector<32x128xf32> to vector<32x64xf32>
    %3 = vector.extract_strided_slice %0 {offsets = [0, 96], sizes = [32, 1], strides = [1, 1]} : vector<32x128xf32> to vector<32x1xf32>
    %4 = tpu.reciprocal %3 : vector<32x1xf32> -> vector<32x1xf32>
    %c0_1 = arith.constant 0 : index
    %c0_2 = arith.constant 0 : index
    %5 = vector.load %arg2[%c0_1, %c0_2] : memref<2x32xf32, #tpu.memory_space<vmem>>, vector<2x32xf32>
    %c0_3 = arith.constant 0 : index
    %c0_4 = arith.constant 0 : index
    %6 = vector.load %arg1[%c0_3, %c0_4] : memref<96x32xf32, #tpu.memory_space<vmem>>, vector<64x32xf32>
    %7 = vector.extract_strided_slice %5 {offsets = [0, 0], sizes = [1, 32], strides = [1, 1]} : vector<2x32xf32> to vector<1x32xf32>
    %cst = arith.constant dense<0.000000e+00> : vector<32x32xf32>
    %8 = tpu.matmul %2, %6, %cst {dimension_numbers = #tpu.dot_dimension_numbers<[1], [0], [0], [1], [0, 0, 1, 1], [], []>} : vector<32x64xf32>, vector<64x32xf32>, vector<32x32xf32> -> vector<32x32xf32>
    %cst_5 = arith.constant dense<0.000000e+00> : vector<32x32xf32>
    %9 = tpu.matmul %1, %8, %cst_5 {dimension_numbers = #tpu.dot_dimension_numbers<[1], [0], [0], [1], [0, 0, 1, 1], [], []>} : vector<32x32xf32>, vector<32x32xf32>, vector<32x32xf32> -> vector<32x32xf32>
    %10 = vector.broadcast %7 : vector<1x32xf32> to vector<32x32xf32>
    %11 = arith.addf %9, %10 : vector<32x32xf32>
    %12 = vector.broadcast %4 : vector<32x1xf32> to vector<32x32xf32>
    %13 = arith.mulf %11, %12 : vector<32x32xf32>
    %cst_6 = arith.constant 0.000000e+00 : f32
    %14 = vector.broadcast %cst_6 : f32 to vector<32x32xf32>
    %15 = arith.maximumf %13, %14 : vector<32x32xf32>
    %c64 = arith.constant 64 : index
    %c0_7 = arith.constant 0 : index
    %16 = vector.load %arg1[%c64, %c0_7] : memref<96x32xf32, #tpu.memory_space<vmem>>, vector<32x32xf32>
    %17 = vector.extract_strided_slice %5 {offsets = [1, 0], sizes = [1, 32], strides = [1, 1]} : vector<2x32xf32> to vector<1x32xf32>
    %cst_8 = arith.constant dense<0.000000e+00> : vector<32x32xf32>
    %18 = tpu.matmul %1, %15, %cst_8 {dimension_numbers = #tpu.dot_dimension_numbers<[1], [0], [0], [1], [0, 0, 1, 1], [], []>} : vector<32x32xf32>, vector<32x32xf32>, vector<32x32xf32> -> vector<32x32xf32>
    %19 = arith.addf %18, %15 : vector<32x32xf32>
    %cst_9 = arith.constant dense<0.000000e+00> : vector<32x32xf32>
    %20 = tpu.matmul %19, %16, %cst_9 {dimension_numbers = #tpu.dot_dimension_numbers<[1], [0], [0], [1], [0, 0, 1, 1], [], []>} : vector<32x32xf32>, vector<32x32xf32>, vector<32x32xf32> -> vector<32x32xf32>
    %cst_10 = arith.constant 2.000000e+00 : f32
    %21 = vector.broadcast %cst_10 : f32 to vector<1x32xf32>
    %22 = arith.mulf %21, %17 : vector<1x32xf32>
    %23 = vector.broadcast %22 : vector<1x32xf32> to vector<32x32xf32>
    %24 = arith.addf %20, %23 : vector<32x32xf32>
    %25 = vector.broadcast %4 : vector<32x1xf32> to vector<32x32xf32>
    %26 = arith.mulf %24, %25 : vector<32x32xf32>
    %cst_11 = arith.constant 0.000000e+00 : f32
    %27 = vector.broadcast %cst_11 : f32 to vector<32x32xf32>
    %28 = arith.maximumf %26, %27 : vector<32x32xf32>
    %c0_12 = arith.constant 0 : index
    %c0_13 = arith.constant 0 : index
    %29 = vector.load %arg3[%c0_12, %c0_13] : memref<32x32xf32, #tpu.memory_space<vmem>>, vector<32x32xf32>
    tpu.vector_store %arg3[%c0_12, %c0_13], %28 {strides = array<i32>} : memref<32x32xf32, #tpu.memory_space<vmem>>, vector<32x32xf32>,
    return
  }
}

</mosaic_0001>

<llo_original>
// kernel: _gcn_forward_impl.1
$region0: #{_gcn_forward_impl.1}
  #allocation0 [shape = 'u32[]', space=smem, size = 0x4, offset = 0x4, fixed_abs, tag = 'smem constant byte address 0x4 - core index']
  #allocation1 [shape = 'u32[144,128]{1,0:T(1,128)}', space=vmem, size = 0x12000, scoped, tag = 'internal scratch']
  %s0 = inlined_call_operand.vmem [shape: f32[32,128], index: 0, kind: input, shape index: {}]
  %s1 = inlined_call_operand.vmem [shape: f32[96,32], index: 1, kind: input, shape index: {}]
  %s2 = inlined_call_operand.vmem [shape: f32[2,32], index: 2, kind: input, shape index: {}]
  %s3 = inlined_call_operand.hbm [shape: f32[32,32], index: 3, kind: output, shape index: {}]
  %s4 = sld [smem:[#allocation0]]
  $region22: #{_gcn_forward_impl.1} parent=0
    _
  %s6 = ssub.s32 1, %s4
  %s7 = scalar_select 0, %s6, %s4
  $region1: #{_gcn_forward_impl.1} parent=0
    #allocation2 [shape = 'u8[16384]{0}', space=vmem, size = 0x4000, scoped, tag = 'output window, operand 0, single buffered']
    #allocation3 [shape = 's32[1]{0}', space=sflag, size = 0x4, scoped, tag = 'scoped memory for _gcn_forward_impl.1']
    %8 = vsyncpa [#allocation3], 0
    // Predicated region
    $region2: #{_gcn_forward_impl.1} parent=1 // pred_check
      _
    $region3: #{_gcn_forward_impl.1} parent=1 // pred_check_branch
      %10 = sbr.rel (0) target = $region5
    $region4: #{_gcn_forward_impl.1} parent=1 // pred_region
      _
    $region5: #{_gcn_forward_impl.1} parent=1 // pred_fallthru
      _
    // Predicated region
    $region6: #{_gcn_forward_impl.1} parent=1 // pred_check
      _
    $region7: #{_gcn_forward_impl.1} parent=1 // pred_check_branch
      %12 = sbr.rel (0) target = $region9
    $region8: #{_gcn_forward_impl.1} parent=1 // pred_region
      _
    $region9: #{_gcn_forward_impl.1} parent=1 // pred_fallthru
      _
    // Predicated region
    $region10: #{_gcn_forward_impl.1} parent=1 // pred_check
      _
    $region11: #{_gcn_forward_impl.1} parent=1 // pred_check_branch
      %14 = sbr.rel (0) target = $region13
    $region12: #{_gcn_forward_impl.1} parent=1 // pred_region
      _
    $region13: #{_gcn_forward_impl.1} parent=1 // pred_fallthru
      _
    %v15 = vld [vmem:[%s0] sm:$0xff]
    %v16 = vld [vmem:[%s0 + $0x8] sm:$0xff]
    %v17 = vld [vmem:[%s0 + $0x10] sm:$0xff]
    %v18 = vld [vmem:[%s0 + $0x18] sm:$0xff]
    %v19 = vrcp.pop %v15
    %v20 = vrcp.pop %v16
    %v21 = vrcp.pop %v17
    %v22 = vrcp.pop %v18
    %v23 = vld [vmem:[%s2] sm:$0x3]
    %v24 = vld [vmem:[%s1] sm:$0xff]
    %v25 = vld [vmem:[%s1 + $0x8] sm:$0xff]
    %v26 = vld [vmem:[%s1 + $0x10] sm:$0xff]
    %v27 = vld [vmem:[%s1 + $0x18] sm:$0xff]
    %v28 = vld [vmem:[%s1 + $0x20] sm:$0xff]
    %v29 = vld [vmem:[%s1 + $0x28] sm:$0xff]
    %v30 = vld [vmem:[%s1 + $0x30] sm:$0xff]
    %v31 = vld [vmem:[%s1 + $0x38] sm:$0xff]
    %36 = vrot.lane.b32.xlu0 %v15, 96
    %v37 = vpop.permute.xlu0 %36
    %38 = vrot.lane.b32.xlu0 %v16, 96
    %v39 = vpop.permute.xlu0 %38
    %40 = vrot.lane.b32.xlu0 %v17, 96
    %v41 = vpop.permute.xlu0 %40
    %42 = vrot.lane.b32.xlu0 %v18, 96
    %v43 = vpop.permute.xlu0 %42
    %vm44 = vcmask 523264
    %v45 = vsel %vm44, %v37, 0
    %v47 = vsel %vm44, %v39, 0
    %v49 = vsel %vm44, %v41, 0
    %v51 = vsel %vm44, %v43, 0
    %53 = vmatprep.subr.mxu0 0.0
    %54 = vmatpush1.msra.mxu0 0.0
    %55 = vmatprep.subr.mxu0 0.0
    %56 = vmatpush1.msra.mxu0 0.0
    %57 = vmatprep.subr.mxu0 0.0
    %58 = vmatpush1.msra.mxu0 0.0
    %59 = vmatprep.subr.mxu0 0.0
    %60 = vmatpush1.msra.mxu0 0.0
    %61 = vmatprep.subr.mxu0 0.0
    %62 = vmatpush1.msra.mxu0 0.0
    %63 = vmatprep.subr.mxu0 0.0
    %64 = vmatpush1.msra.mxu0 0.0
    %65 = vmatprep.subr.mxu0 0.0
    %66 = vmatpush1.msra.mxu0 0.0
    %67 = vmatprep.subr.mxu0 0.0
    %68 = vmatpush1.msra.mxu0 0.0
    %69 = vmatprep.subr.mxu0 0.0
    %70 = vmatpush1.msra.mxu0 %v31
    %71 = vmatprep.subr.mxu0 0.0
    %72 = vmatpush1.msra.mxu0 %v30
    %73 = vmatprep.subr.mxu0 0.0
    %74 = vmatpush1.msra.mxu0 %v29
    %75 = vmatprep.subr.mxu0 0.0
    %76 = vmatpush1.msra.mxu0 %v28
    %77 = vmatprep.subr.mxu0 0.0
    %78 = vmatpush1.msra.mxu0 %v27
    %79 = vmatprep.subr.mxu0 0.0
    %80 = vmatpush1.msra.mxu0 %v26
    %81 = vmatprep.subr.mxu0 0.0
    %82 = vmatpush1.msra.mxu0 %v25
    %83 = vmatprep.subr.mxu0 0.0
    %84 = vmatpush1.msra.mxu0 %v24
    %85 = vmatprep.subr.mxu0 0.0
    %86 = vmatpush2.msra.mxu0 0.0
    %87 = vmatprep.subr.mxu0 0.0
    %88 = vmatpush2.msra.mxu0 0.0
    %89 = vmatprep.subr.mxu0 0.0
    %90 = vmatpush2.msra.mxu0 0.0
    %91 = vmatprep.subr.mxu0 0.0
    %92 = vmatpush2.msra.mxu0 0.0
    %93 = vmatprep.subr.mxu0 0.0
    %94 = vmatpush2.msra.mxu0 0.0
    %95 = vmatprep.subr.mxu0 0.0
    %96 = vmatpush2.msra.mxu0 0.0
    %97 = vmatprep.subr.mxu0 0.0
    %98 = vmatpush2.msra.mxu0 0.0
    %99 = vmatprep.subr.mxu0 0.0
    %100 = vmatpush2.msra.mxu0 0.0
    %101 = vmatprep.subr.mxu0 0.0
    %102 = vmatpush2.msra.mxu0 0.0
    %103 = vmatprep.subr.mxu0 0.0
    %104 = vmatpush2.msra.mxu0 0.0
    %105 = vmatprep.subr.mxu0 0.0
    %106 = vmatpush2.msra.mxu0 0.0
    %107 = vmatprep.subr.mxu0 0.0
    %108 = vmatpush2.msra.mxu0 0.0
    %109 = vmatprep.subr.mxu0 0.0
    %110 = vmatpush2.msra.mxu0 0.0
    %111 = vmatprep.subr.mxu0 0.0
    %112 = vmatpush2.msra.mxu0 0.0
    %113 = vmatprep.subr.mxu0 0.0
    %114 = vmatpush2.msra.mxu0 0.0
    %115 = vmatprep.subr.mxu0 0.0
    %116 = vmatpush2.msra.mxu0 0.0
    %117 = vmatprep.mubr.f32.mxu0 0.0
    %118 = vmatmul.mubr.f32.gmra.mxu0 %v45
    %v119 = vpop.f32.mrf.mxu0
    %v120 = vadd.f32 0.0, %v119
    %v121 = vpop.f32.mrf.mxu0
    %122 = vmatprep.mubr.f32.mxu0 0.0
    %123 = vmatmul.mubr.f32.gmra.mxu0 %v47
    %v124 = vpop.f32.mrf.mxu0
    %v125 = vadd.f32 0.0, %v124
    %v126 = vpop.f32.mrf.mxu0
    %127 = vmatprep.mubr.f32.mxu0 0.0
    %128 = vmatmul.mubr.f32.gmra.mxu0 %v49
    %v129 = vpop.f32.mrf.mxu0
    %v130 = vadd.f32 0.0, %v129
    %v131 = vpop.f32.mrf.mxu0
    %132 = vmatprep.mubr.f32.mxu0 0.0
    %133 = vmatmul.mubr.f32.gmra.mxu0 %v51
    %v134 = vpop.f32.mrf.mxu0
    %v135 = vadd.f32 0.0, %v134
    %v136 = vpop.f32.mrf.mxu0
    %137 = vdwg.mxu0
    %v138 = vlaneseq
    %v139 = vshrl.u32 %v138, 7
    %v140 = vsub.s32 0, %v139
    %v141 = vrot.slane %v23, %v140
    %vm142 = vcmask 261120
    %v143 = vsel %vm142, %v15, 0
    %v145 = vsel %vm142, %v16, 0
    %v147 = vsel %vm142, %v17, 0
    %v149 = vsel %vm142, %v18, 0
    %151 = vmatprep.subr.mxu0 0.0
    %152 = vmatpush1.msra.mxu0 0.0
    %153 = vmatprep.subr.mxu0 0.0
    %154 = vmatpush1.msra.mxu0 0.0
    %155 = vmatprep.subr.mxu0 0.0
    %156 = vmatpush1.msra.mxu0 0.0
    %157 = vmatprep.subr.mxu0 0.0
    %158 = vmatpush1.msra.mxu0 0.0
    %159 = vmatprep.subr.mxu0 0.0
    %160 = vmatpush1.msra.mxu0 0.0
    %161 = vmatprep.subr.mxu0 0.0
    %162 = vmatpush1.msra.mxu0 0.0
    %163 = vmatprep.subr.mxu0 0.0
    %164 = vmatpush1.msra.mxu0 0.0
    %165 = vmatprep.subr.mxu0 0.0
    %166 = vmatpush1.msra.mxu0 0.0
    %167 = vmatprep.subr.mxu0 0.0
    %168 = vmatpush1.msra.mxu0 0.0
    %169 = vmatprep.subr.mxu0 0.0
    %170 = vmatpush1.msra.mxu0 0.0
    %171 = vmatprep.subr.mxu0 0.0
    %172 = vmatpush1.msra.mxu0 0.0
    %173 = vmatprep.subr.mxu0 0.0
    %174 = vmatpush1.msra.mxu0 0.0
    %175 = vmatprep.subr.mxu0 0.0
    %176 = vmatpush1.msra.mxu0 %v135
    %177 = vmatprep.subr.mxu0 0.0
    %178 = vmatpush1.msra.mxu0 %v130
    %179 = vmatprep.subr.mxu0 0.0
    %180 = vmatpush1.msra.mxu0 %v125
    %181 = vmatprep.subr.mxu0 0.0
    %182 = vmatpush1.msra.mxu0 %v120
    %183 = vmatprep.subr.mxu0 0.0
    %184 = vmatpush2.msra.mxu0 0.0
    %185 = vmatprep.subr.mxu0 0.0
    %186 = vmatpush2.msra.mxu0 0.0
    %187 = vmatprep.subr.mxu0 0.0
    %188 = vmatpush2.msra.mxu0 0.0
    %189 = vmatprep.subr.mxu0 0.0
    %190 = vmatpush2.msra.mxu0 0.0
    %191 = vmatprep.subr.mxu0 0.0
    %192 = vmatpush2.msra.mxu0 0.0
    %193 = vmatprep.subr.mxu0 0.0
    %194 = vmatpush2.msra.mxu0 0.0
    %195 = vmatprep.subr.mxu0 0.0
    %196 = vmatpush2.msra.mxu0 0.0
    %197 = vmatprep.subr.mxu0 0.0
    %198 = vmatpush2.msra.mxu0 0.0
    %199 = vmatprep.subr.mxu0 0.0
    %200 = vmatpush2.msra.mxu0 0.0
    %201 = vmatprep.subr.mxu0 0.0
    %202 = vmatpush2.msra.mxu0 0.0
    %203 = vmatprep.subr.mxu0 0.0
    %204 = vmatpush2.msra.mxu0 0.0
    %205 = vmatprep.subr.mxu0 0.0
    %206 = vmatpush2.msra.mxu0 0.0
    %207 = vmatprep.subr.mxu0 0.0
    %208 = vmatpush2.msra.mxu0 0.0
    %209 = vmatprep.subr.mxu0 0.0
    %210 = vmatpush2.msra.mxu0 0.0
    %211 = vmatprep.subr.mxu0 0.0
    %212 = vmatpush2.msra.mxu0 0.0
    %213 = vmatprep.subr.mxu0 0.0
    %214 = vmatpush2.msra.mxu0 0.0
    %215 = vmatprep.mubr.f32.mxu0 0.0
    %216 = vmatmul.mubr.f32.gmra.mxu0 %v143
    %v217 = vpop.f32.mrf.mxu0
    %v218 = vadd.f32 %v141, %v217
    %v219 = vpop.f32.mrf.mxu0
    %220 = vmatprep.mubr.f32.mxu0 0.0
    %221 = vmatmul.mubr.f32.gmra.mxu0 %v145
    %v222 = vpop.f32.mrf.mxu0
    %v223 = vadd.f32 %v141, %v222
    %v224 = vpop.f32.mrf.mxu0
    %225 = vmatprep.mubr.f32.mxu0 0.0
    %226 = vmatmul.mubr.f32.gmra.mxu0 %v147
    %v227 = vpop.f32.mrf.mxu0
    %v228 = vadd.f32 %v141, %v227
    %v229 = vpop.f32.mrf.mxu0
    %230 = vmatprep.mubr.f32.mxu0 0.0
    %231 = vmatmul.mubr.f32.gmra.mxu0 %v149
    %v232 = vpop.f32.mrf.mxu0
    %v233 = vadd.f32 %v141, %v232
    %v234 = vpop.f32.mrf.mxu0
    %235 = vdwg.mxu0
    %237 = vset.pattern.permute.xlu0 96
    %238 = vperm.xlu0 %237, %v19
    %v239 = vpop.permute.xlu0 %238
    %242 = vset.pattern.permute.xlu0 96
    %243 = vperm.xlu0 %242, %v20
    %v244 = vpop.permute.xlu0 %243
    %247 = vset.pattern.permute.xlu0 96
    %248 = vperm.xlu0 %247, %v21
    %v249 = vpop.permute.xlu0 %248
    %252 = vset.pattern.permute.xlu0 96
    %253 = vperm.xlu0 %252, %v22
    %v254 = vpop.permute.xlu0 %253
    %v256 = vmul.f32 %v218, %v239
    %v257 = vmul.f32 %v223, %v244
    %v258 = vmul.f32 %v228, %v249
    %v259 = vmul.f32 %v233, %v254
    %v260 = vmax.f32 %v256, 0.0
    %v261 = vmax.f32 %v257, 0.0
    %v262 = vmax.f32 %v258, 0.0
    %v263 = vmax.f32 %v259, 0.0
    %v264 = vld [vmem:[%s1 + $0x40] sm:$0xff]
    %v265 = vld [vmem:[%s1 + $0x48] sm:$0xff]
    %v266 = vld [vmem:[%s1 + $0x50] sm:$0xff]
    %v267 = vld [vmem:[%s1 + $0x58] sm:$0xff]
    %268 = vmatprep.subr.mxu0 0.0
    %269 = vmatpush1.msra.mxu0 0.0
    %270 = vmatprep.subr.mxu0 0.0
    %271 = vmatpush1.msra.mxu0 0.0
    %272 = vmatprep.subr.mxu0 0.0
    %273 = vmatpush1.msra.mxu0 0.0
    %274 = vmatprep.subr.mxu0 0.0
    %275 = vmatpush1.msra.mxu0 0.0
    %276 = vmatprep.subr.mxu0 0.0
    %277 = vmatpush1.msra.mxu0 0.0
    %278 = vmatprep.subr.mxu0 0.0
    %279 = vmatpush1.msra.mxu0 0.0
    %280 = vmatprep.subr.mxu0 0.0
    %281 = vmatpush1.msra.mxu0 0.0
    %282 = vmatprep.subr.mxu0 0.0
    %283 = vmatpush1.msra.mxu0 0.0
    %284 = vmatprep.subr.mxu0 0.0
    %285 = vmatpush1.msra.mxu0 0.0
    %286 = vmatprep.subr.mxu0 0.0
    %287 = vmatpush1.msra.mxu0 0.0
    %288 = vmatprep.subr.mxu0 0.0
    %289 = vmatpush1.msra.mxu0 0.0
    %290 = vmatprep.subr.mxu0 0.0
    %291 = vmatpush1.msra.mxu0 0.0
    %292 = vmatprep.subr.mxu0 0.0
    %293 = vmatpush1.msra.mxu0 %v263
    %294 = vmatprep.subr.mxu0 0.0
    %295 = vmatpush1.msra.mxu0 %v262
    %296 = vmatprep.subr.mxu0 0.0
    %297 = vmatpush1.msra.mxu0 %v261
    %298 = vmatprep.subr.mxu0 0.0
    %299 = vmatpush1.msra.mxu0 %v260
    %300 = vmatprep.subr.mxu0 0.0
    %301 = vmatpush2.msra.mxu0 0.0
    %302 = vmatprep.subr.mxu0 0.0
    %303 = vmatpush2.msra.mxu0 0.0
    %304 = vmatprep.subr.mxu0 0.0
    %305 = vmatpush2.msra.mxu0 0.0
    %306 = vmatprep.subr.mxu0 0.0
    %307 = vmatpush2.msra.mxu0 0.0
    %308 = vmatprep.subr.mxu0 0.0
    %309 = vmatpush2.msra.mxu0 0.0
    %310 = vmatprep.subr.mxu0 0.0
    %311 = vmatpush2.msra.mxu0 0.0
    %312 = vmatprep.subr.mxu0 0.0
    %313 = vmatpush2.msra.mxu0 0.0
    %314 = vmatprep.subr.mxu0 0.0
    %315 = vmatpush2.msra.mxu0 0.0
    %316 = vmatprep.subr.mxu0 0.0
    %317 = vmatpush2.msra.mxu0 0.0
    %318 = vmatprep.subr.mxu0 0.0
    %319 = vmatpush2.msra.mxu0 0.0
    %320 = vmatprep.subr.mxu0 0.0
    %321 = vmatpush2.msra.mxu0 0.0
    %322 = vmatprep.subr.mxu0 0.0
    %323 = vmatpush2.msra.mxu0 0.0
    %324 = vmatprep.subr.mxu0 0.0
    %325 = vmatpush2.msra.mxu0 0.0
    %326 = vmatprep.subr.mxu0 0.0
    %327 = vmatpush2.msra.mxu0 0.0
    %328 = vmatprep.subr.mxu0 0.0
    %329 = vmatpush2.msra.mxu0 0.0
    %330 = vmatprep.subr.mxu0 0.0
    %331 = vmatpush2.msra.mxu0 0.0
    %332 = vmatprep.mubr.f32.mxu0 0.0
    %333 = vmatmul.mubr.f32.gmra.mxu0 %v143
    %v334 = vpop.f32.mrf.mxu0
    %v335 = vadd.f32 %v260, %v334
    %v336 = vpop.f32.mrf.mxu0
    %337 = vmatprep.mubr.f32.mxu0 0.0
    %338 = vmatmul.mubr.f32.gmra.mxu0 %v145
    %v339 = vpop.f32.mrf.mxu0
    %v340 = vadd.f32 %v261, %v339
    %v341 = vpop.f32.mrf.mxu0
    %342 = vmatprep.mubr.f32.mxu0 0.0
    %343 = vmatmul.mubr.f32.gmra.mxu0 %v147
    %v344 = vpop.f32.mrf.mxu0
    %v345 = vadd.f32 %v262, %v344
    %v346 = vpop.f32.mrf.mxu0
    %347 = vmatprep.mubr.f32.mxu0 0.0
    %348 = vmatmul.mubr.f32.gmra.mxu0 %v149
    %v349 = vpop.f32.mrf.mxu0
    %v350 = vadd.f32 %v263, %v349
    %v351 = vpop.f32.mrf.mxu0
    %352 = vdwg.mxu0
    %v353 = vmul.f32 %v23, 2.0
    %v354 = vlaneseq
    %v355 = vshrl.u32 %v354, 7
    %v356 = vsub.s32 1, %v355
    %v357 = vrot.slane %v353, %v356
    %v359 = vsel %vm142, %v335, 0
    %v362 = vsel %vm142, %v340, 0
    %v365 = vsel %vm142, %v345, 0
    %v368 = vsel %vm142, %v350, 0
    %370 = vmatprep.subr.mxu0 0.0
    %371 = vmatpush1.msra.mxu0 0.0
    %372 = vmatprep.subr.mxu0 0.0
    %373 = vmatpush1.msra.mxu0 0.0
    %374 = vmatprep.subr.mxu0 0.0
    %375 = vmatpush1.msra.mxu0 0.0
    %376 = vmatprep.subr.mxu0 0.0
    %377 = vmatpush1.msra.mxu0 0.0
    %378 = vmatprep.subr.mxu0 0.0
    %379 = vmatpush1.msra.mxu0 0.0
    %380 = vmatprep.subr.mxu0 0.0
    %381 = vmatpush1.msra.mxu0 0.0
    %382 = vmatprep.subr.mxu0 0.0
    %383 = vmatpush1.msra.mxu0 0.0
    %384 = vmatprep.subr.mxu0 0.0
    %385 = vmatpush1.msra.mxu0 0.0
    %386 = vmatprep.subr.mxu0 0.0
    %387 = vmatpush1.msra.mxu0 0.0
    %388 = vmatprep.subr.mxu0 0.0
    %389 = vmatpush1.msra.mxu0 0.0
    %390 = vmatprep.subr.mxu0 0.0
    %391 = vmatpush1.msra.mxu0 0.0
    %392 = vmatprep.subr.mxu0 0.0
    %393 = vmatpush1.msra.mxu0 0.0
    %394 = vmatprep.subr.mxu0 0.0
    %395 = vmatpush1.msra.mxu0 %v267
    %396 = vmatprep.subr.mxu0 0.0
    %397 = vmatpush1.msra.mxu0 %v266
    %398 = vmatprep.subr.mxu0 0.0
    %399 = vmatpush1.msra.mxu0 %v265
    %400 = vmatprep.subr.mxu0 0.0
    %401 = vmatpush1.msra.mxu0 %v264
    %402 = vmatprep.subr.mxu0 0.0
    %403 = vmatpush2.msra.mxu0 0.0
    %404 = vmatprep.subr.mxu0 0.0
    %405 = vmatpush2.msra.mxu0 0.0
    %406 = vmatprep.subr.mxu0 0.0
    %407 = vmatpush2.msra.mxu0 0.0
    %408 = vmatprep.subr.mxu0 0.0
    %409 = vmatpush2.msra.mxu0 0.0
    %410 = vmatprep.subr.mxu0 0.0
    %411 = vmatpush2.msra.mxu0 0.0
    %412 = vmatprep.subr.mxu0 0.0
    %413 = vmatpush2.msra.mxu0 0.0
    %414 = vmatprep.subr.mxu0 0.0
    %415 = vmatpush2.msra.mxu0 0.0
    %416 = vmatprep.subr.mxu0 0.0
    %417 = vmatpush2.msra.mxu0 0.0
    %418 = vmatprep.subr.mxu0 0.0
    %419 = vmatpush2.msra.mxu0 0.0
    %420 = vmatprep.subr.mxu0 0.0
    %421 = vmatpush2.msra.mxu0 0.0
    %422 = vmatprep.subr.mxu0 0.0
    %423 = vmatpush2.msra.mxu0 0.0
    %424 = vmatprep.subr.mxu0 0.0
    %425 = vmatpush2.msra.mxu0 0.0
    %426 = vmatprep.subr.mxu0 0.0
    %427 = vmatpush2.msra.mxu0 0.0
    %428 = vmatprep.subr.mxu0 0.0
    %429 = vmatpush2.msra.mxu0 0.0
    %430 = vmatprep.subr.mxu0 0.0
    %431 = vmatpush2.msra.mxu0 0.0
    %432 = vmatprep.subr.mxu0 0.0
    %433 = vmatpush2.msra.mxu0 0.0
    %434 = vmatprep.mubr.f32.mxu0 0.0
    %435 = vmatmul.mubr.f32.gmra.mxu0 %v359
    %v436 = vpop.f32.mrf.mxu0
    %v437 = vadd.f32 %v357, %v436
    %v438 = vpop.f32.mrf.mxu0
    %439 = vmatprep.mubr.f32.mxu0 0.0
    %440 = vmatmul.mubr.f32.gmra.mxu0 %v362
    %v441 = vpop.f32.mrf.mxu0
    %v442 = vadd.f32 %v357, %v441
    %v443 = vpop.f32.mrf.mxu0
    %444 = vmatprep.mubr.f32.mxu0 0.0
    %445 = vmatmul.mubr.f32.gmra.mxu0 %v365
    %v446 = vpop.f32.mrf.mxu0
    %v447 = vadd.f32 %v357, %v446
    %v448 = vpop.f32.mrf.mxu0
    %449 = vmatprep.mubr.f32.mxu0 0.0
    %450 = vmatmul.mubr.f32.gmra.mxu0 %v368
    %v451 = vpop.f32.mrf.mxu0
    %v452 = vadd.f32 %v357, %v451
    %v453 = vpop.f32.mrf.mxu0
    %454 = vdwg.mxu0
    %v455 = vmul.f32 %v437, %v239
    %v456 = vmul.f32 %v442, %v244
    %v457 = vmul.f32 %v447, %v249
    %v458 = vmul.f32 %v452, %v254
    %v459 = vmax.f32 %v455, 0.0
    %v460 = vmax.f32 %v456, 0.0
    %v461 = vmax.f32 %v457, 0.0
    %v462 = vmax.f32 %v458, 0.0
    %463 = vst.msk [vmem:[#allocation2] sm:$0xff] %vm142, %v459
    %464 = vst.msk [vmem:[#allocation2 + $0x8] sm:$0xff] %vm142, %v460
    %465 = vst.msk [vmem:[#allocation2 + $0x10] sm:$0xff] %vm142, %v461
    %466 = vst.msk [vmem:[#allocation2 + $0x18] sm:$0xff] %vm142, %v462
    // Predicated region
    $region14: #{_gcn_forward_impl.1} parent=1 // pred_check
      _
    $region15: #{_gcn_forward_impl.1} parent=1 // pred_check_branch
      %468 = sbr.rel (0) target = $region17
    $region16: #{_gcn_forward_impl.1} parent=1 // pred_region
      %s470 = ssub.s32 512, 512
      %471 = vsyncadd [#allocation3], %s470
      %s472 = sshll.u32 [#allocation2], 4
      %s473 = int_to_ptr.vmem [resolvable:$true] %s472
      %478 = dma.vmem_to_hbm [thread:$0]  %s473, 512, %s3, [#allocation3], 128, 128, 8
    $region17: #{_gcn_forward_impl.1} parent=1 // pred_fallthru
      _
    // Predicated region
    $region18: #{_gcn_forward_impl.1} parent=1 // pred_check
      _
    $region19: #{_gcn_forward_impl.1} parent=1 // pred_check_branch
      %480 = sbr.rel (0) target = $region21
    $region20: #{_gcn_forward_impl.1} parent=1 // pred_region
      %481 = dma.done [#allocation3], 512
    $region21: #{_gcn_forward_impl.1} parent=1 // pred_fallthru
      _
    %482 = vsyncpa [#allocation3], 1

</llo_original>
